<compile_context>
chip_gen: v7x
topology: tpu7x:2x2x1
jax: 0.10.0
libtpu: 0.0.40
codegen_flags: <defaults>
</compile_context>

<pallas_src>
import functools

import jax
import jax.numpy as jnp
from jax.experimental import pallas as pl
from jax.experimental.pallas import tpu as pltpu


def _h_swish_kernel(x_ref, o_ref, *, compute_dtype):
    x = x_ref[...].astype(compute_dtype)
    # h_sigmoid(x) = relu6(x + 3) / 6 ; h_swish(x) = x * h_sigmoid(x)
    hs = jnp.clip(x + 3.0, 0.0, 6.0) * (1.0 / 6.0)
    o_ref[...] = (x * hs).astype(o_ref.dtype)


def _ceil_div(a, b):
    return (a + b - 1) // b


def _round_up(a, m):
    return _ceil_div(a, m) * m


@functools.lru_cache(maxsize=1)
def _tpu_generation():
    """Best-effort TPU generation from device_kind; 0 if unknown."""
    try:
        kind = jax.devices()[0].device_kind.lower()
    except Exception:  # pragma: no cover - defensive; defaults are safe
        return 0
    if "v7" in kind or "tpu7" in kind:
        return 7
    if "v6" in kind:
        return 6
    if "v5" in kind:
        return 5
    if "v4" in kind:
        return 4
    return 0


def _choose_lane_width(n_aligned):
    # n_aligned is a multiple of 128; pick the widest lane dim that divides it.
    for w in (4096, 2048, 1024, 512, 256, 128):
        if n_aligned % w == 0:
            return w
    return 128


def _choose_tile_rows(rows, lane_w, itemsize, target_bytes):
    bytes_per_row = lane_w * itemsize
    total_bytes = rows * bytes_per_row
    # Sublane-packing multiple per dtype (f32: 8, bf16: 16, int8/fp8: 32).
    sub = max(8, 32 // max(itemsize, 1))
    # Slabs under ~2 MiB: a single block; pipelining / megacore split is not
    # worth the per-step overhead there.
    if total_bytes <= (2 << 20) or rows <= sub:
        return rows
    tr_cap = max((target_bytes // bytes_per_row) // sub * sub, sub)    # VMEM cap
    tr_floor = max(((512 << 10) // bytes_per_row) // sub * sub, sub)   # >=512 KiB blocks
    tr_bal = _round_up(_ceil_div(rows, 4), sub)                        # aim for >=4 steps
    tr = max(min(tr_cap, tr_bal), tr_floor)
    # Never collapse a >2 MiB slab to grid=1: at least 2 steps keeps the
    # input-DMA / compute / output-DMA pipeline overlapped and feeds both
    # v7x TensorCores.
    tr = min(tr, max(sub, _round_up(_ceil_div(rows, 2), sub)))
    return tr


def h_swish(x: jax.Array) -> jax.Array:
    """Hard-swish, elementwise; accepts any shape (NCHW expected) / float dtype."""
    orig_shape = x.shape
    dtype = x.dtype
    n = x.size
    if n == 0:
        return x

    gen = _tpu_generation()
    # v7x: ~3.2+ TB/s HBM per TC -> bigger blocks so per-step overhead stays
    # small; 4 double-buffered 8 MiB blocks = 32 MiB < 64 MiB physical VMEM.
    # v5e/v6e keep 4 MiB blocks / 32 MiB scoped limit (v5e default is only
    # 16 MiB, so the explicit limit is required there).
    target_block_bytes = (8 << 20) if gen >= 7 else (4 << 20)
    vmem_limit_bytes = (48 << 20) if gen >= 7 else (32 << 20)
    # Native bf16 compute on chips with a bf16 VPU (v6e/v7x); f32 elsewhere.
    compute_dtype = dtype if (gen >= 6 and dtype == jnp.bfloat16) else jnp.float32

    itemsize = jnp.dtype(dtype).itemsize
    x_flat = x.reshape(-1)

    # Zero-copy fast path when the element count is 128-aligned (typical conv
    # feature maps).  Otherwise pad once to the next multiple of 128 and slice
    # the result back (~2 extra HBM passes, ragged sizes only).
    n_pad = _round_up(n, 128)
    padded = n_pad != n
    x_work = jnp.pad(x_flat, (0, n_pad - n)) if padded else x_flat

    lane_w = _choose_lane_width(n_pad)
    rows = n_pad // lane_w
    tr = _choose_tile_rows(rows, lane_w, itemsize, target_block_bytes)
    grid = pl.cdiv(rows, tr)

    kernel = functools.partial(_h_swish_kernel, compute_dtype=compute_dtype)
    out2d = pl.pallas_call(
        kernel,
        out_shape=jax.ShapeDtypeStruct((rows, lane_w), dtype),
        grid_spec=pltpu.PrefetchScalarGridSpec(
            num_scalar_prefetch=0,
            grid=(grid,),
            in_specs=[pl.BlockSpec((tr, lane_w), lambda i: (i, 0))],
            out_specs=pl.BlockSpec((tr, lane_w), lambda i: (i, 0)),
        ),
        compiler_params=pltpu.CompilerParams(
            dimension_semantics=("parallel",),
            vmem_limit_bytes=vmem_limit_bytes,
        ),
        cost_estimate=pl.CostEstimate(
            flops=5 * n_pad,
            transcendentals=0,
            bytes_accessed=2 * n_pad * itemsize,
        ),
    )(x_work.reshape(rows, lane_w))

    out_flat = out2d.reshape(-1)
    if padded:
        out_flat = out_flat[:n]
    return out_flat.reshape(orig_shape)


def _h_swish_ref(x):
    # Faithful to the PyTorch module: x * relu6(x + 3) / 6
    xf = x.astype(jnp.float32)
    return xf * (jnp.clip(xf + 3.0, 0.0, 6.0) / 6.0)


if __name__ == "__main__":
    key = jax.random.PRNGKey(0)
    # NCHW input, consistent with the PyTorch module's conv-style usage.
    x = jax.random.normal(key, (2, 4, 16, 16), dtype=jnp.float32) * 4.0
    y = jax.block_until_ready(h_swish(x))
    assert y.shape == x.shape and y.dtype == x.dtype
    assert jnp.allclose(y, _h_swish_ref(x), atol=1e-6, rtol=1e-5), "f32 mismatch"

    # Ragged-size path (element count not a multiple of 128) -> pad-once path.
    x2 = jax.random.normal(jax.random.PRNGKey(0), (2, 3, 11, 13), dtype=jnp.float32) * 4.0
    y2 = jax.block_until_ready(h_swish(x2))
    assert y2.shape == x2.shape and y2.dtype == x2.dtype
    assert jnp.allclose(y2, _h_swish_ref(x2), atol=1e-6, rtol=1e-5), "ragged mismatch"

    # bf16 path (native bf16 compute on v6e/v7x, f32 on v5e) -> loose tolerance.
    x3 = jax.random.normal(jax.random.PRNGKey(0), (2, 8, 32, 32), dtype=jnp.bfloat16) * 4.0
    y3 = jax.block_until_ready(h_swish(x3))
    assert y3.shape == x3.shape and y3.dtype == x3.dtype
    assert jnp.allclose(y3.astype(jnp.float32), _h_swish_ref(x3),
                        atol=0.05, rtol=0.05), "bf16 mismatch"

    print("KERNEL_OK")
</pallas_src>

<mosaic_0001>
module attributes {stable_mosaic.version = 11 : i64} {
  func.func @_h_swish_kernel(%arg0: i32, %arg1: memref<1x2048xf32, #tpu.memory_space<vmem>>, %arg2: memref<1x2048xf32, #tpu.memory_space<vmem>>) attributes {dimension_semantics = [#tpu.dimension_semantics<parallel>], iteration_bounds = array<i64: 1>, scalar_prefetch = 0 : i64, scratch_operands = 0 : i64, tpu.core_type = #tpu.core_type<tc>, window_params = [{transform_indices = @transform_0, window_bounds = array<i64: 1, 2048>}, {transform_indices = @transform_1, window_bounds = array<i64: 1, 2048>}]} {
    %c0 = arith.constant 0 : index
    %c0_0 = arith.constant 0 : index
    %0 = vector.load %arg1[%c0, %c0_0] : memref<1x2048xf32, #tpu.memory_space<vmem>>, vector<1x2048xf32>
    %cst = arith.constant 3.000000e+00 : f32
    %1 = vector.broadcast %cst : f32 to vector<1x2048xf32>
    %2 = arith.addf %0, %1 : vector<1x2048xf32>
    %cst_1 = arith.constant 0.000000e+00 : f32
    %cst_2 = arith.constant 6.000000e+00 : f32
    %3 = vector.broadcast %cst_1 : f32 to vector<1x2048xf32>
    %4 = arith.maximumf %3, %2 : vector<1x2048xf32>
    %5 = vector.broadcast %cst_2 : f32 to vector<1x2048xf32>
    %6 = arith.minimumf %5, %4 : vector<1x2048xf32>
    %cst_3 = arith.constant 0.166666672 : f32
    %7 = vector.broadcast %cst_3 : f32 to vector<1x2048xf32>
    %8 = arith.mulf %6, %7 : vector<1x2048xf32>
    %9 = arith.mulf %0, %8 : vector<1x2048xf32>
    %c0_4 = arith.constant 0 : index
    %c0_5 = arith.constant 0 : index
    %10 = vector.load %arg2[%c0_4, %c0_5] : memref<1x2048xf32, #tpu.memory_space<vmem>>, vector<1x2048xf32>
    tpu.vector_store %arg2[%c0_4, %c0_5], %9 {strides = array<i32>} : memref<1x2048xf32, #tpu.memory_space<vmem>>, vector<1x2048xf32>,
    return
  }
  func.func @transform_0(%arg0: i32) -> (i32, i32) {
    %c0_i32 = arith.constant 0 : i32
    %c0_i32_0 = arith.constant 0 : i32
    return %arg0, %c0_i32 : i32, i32
  }
  func.func @transform_1(%arg0: i32) -> (i32, i32) {
    %c0_i32 = arith.constant 0 : i32
    %c0_i32_0 = arith.constant 0 : i32
    return %arg0, %c0_i32 : i32, i32
  }
}

</mosaic_0001>

<llo_original>
// kernel: tpu_custom_call.1
$region0: #{tpu_custom_call.1}
  #allocation0 [shape = 'u32[]', space=smem, size = 0x4, offset = 0x4, fixed_abs, tag = 'smem constant byte address 0x4 - core index']
  #allocation1 [shape = 'u32[144,128]{1,0:T(1,128)}', space=vmem, size = 0x12000, scoped, tag = 'internal scratch']
  %s0 = inlined_call_operand.hbm [shape: f32[1,2048], index: 0, kind: input, shape index: {}]
  %s1 = inlined_call_operand.hbm [shape: f32[1,2048], index: 1, kind: output, shape index: {}]
  %s2 = sld [smem:[#allocation0]]
  $region18: #{tpu_custom_call.1} parent=0
    _
  %s4 = ssub.s32 1, %s2
  %s5 = scalar_select 0, %s4, %s2
  $region1: #{tpu_custom_call.1} parent=0
    #allocation2 [shape = 'u8[8192]{0}', space=vmem, size = 0x2000, scoped, tag = 'input window, operand 0, single buffered']
    #allocation3 [shape = 's32[1]{0}', space=sflag, size = 0x4, scoped, tag = 'scoped memory for tpu_custom_call.1']
    #allocation4 [shape = 's32[1]{0}', space=sflag, size = 0x4, scoped, tag = 'scoped memory for tpu_custom_call.1']
    #allocation5 [shape = 'u8[8192]{0}', space=vmem, size = 0x2000, scoped, tag = 'output window, operand 0, single buffered']
    %6 = vsyncpa [#allocation3], 0
    %7 = vsyncpa [#allocation4], 0
    // Predicated region
    $region2: #{tpu_custom_call.1} parent=1 // pred_check
      _
    $region3: #{tpu_custom_call.1} parent=1 // pred_check_branch
      %9 = sbr.rel (0) target = $region5
    $region4: #{tpu_custom_call.1} parent=1 // pred_region
      %s11 = ssub.s32 256, 256
      %12 = vsyncadd [#allocation3], %s11
      %s14 = sshll.u32 [#allocation2], 4
      %s15 = int_to_ptr.vmem [resolvable:$true] %s14
      %17 = dma.hbm_to_vmem [thread:$0]  %s0, 256, %s15, [#allocation3]
    $region5: #{tpu_custom_call.1} parent=1 // pred_fallthru
      _
    // Predicated region
    $region6: #{tpu_custom_call.1} parent=1 // pred_check
      _
    $region7: #{tpu_custom_call.1} parent=1 // pred_check_branch
      %19 = sbr.rel (0) target = $region9
    $region8: #{tpu_custom_call.1} parent=1 // pred_region
      %20 = dma.done [#allocation3], 256
    $region9: #{tpu_custom_call.1} parent=1 // pred_fallthru
      _
    %v21 = vld [vmem:[#allocation2] sm:$0xff]
    %v22 = vld [vmem:[#allocation2 + $0x8] sm:$0xff]
    %v23 = vadd.f32 %v21, 3.0
    %v24 = vadd.f32 %v22, 3.0
    %v25 = vmax.f32 %v23, 0.0
    %v26 = vmax.f32 %v24, 0.0
    %v27 = vmin.f32 %v25, 6.0
    %v28 = vmin.f32 %v26, 6.0
    %v29 = vmul.f32 %v27, 0.16666667
    %v30 = vmul.f32 %v28, 0.16666667
    %v31 = vmul.f32 %v21, %v29
    %v32 = vmul.f32 %v22, %v30
    %33 = vst [vmem:[#allocation5] sm:$0xff] %v31
    %34 = vst [vmem:[#allocation5 + $0x8] sm:$0xff] %v32
    // Predicated region
    $region10: #{tpu_custom_call.1} parent=1 // pred_check
      _
    $region11: #{tpu_custom_call.1} parent=1 // pred_check_branch
      %36 = sbr.rel (0) target = $region13
    $region12: #{tpu_custom_call.1} parent=1 // pred_region
      %s38 = ssub.s32 256, 256
      %39 = vsyncadd [#allocation4], %s38
      %s41 = sshll.u32 [#allocation5], 4
      %s42 = int_to_ptr.vmem [resolvable:$true] %s41
      %44 = dma.vmem_to_hbm [thread:$0]  %s42, 256, %s1, [#allocation4]
    $region13: #{tpu_custom_call.1} parent=1 // pred_fallthru
      _
    // Predicated region
    $region14: #{tpu_custom_call.1} parent=1 // pred_check
      _
    $region15: #{tpu_custom_call.1} parent=1 // pred_check_branch
      %46 = sbr.rel (0) target = $region17
    $region16: #{tpu_custom_call.1} parent=1 // pred_region
      %47 = dma.done [#allocation4], 256
    $region17: #{tpu_custom_call.1} parent=1 // pred_fallthru
      _
    %48 = vsyncpa [#allocation3], 1
    %49 = vsyncpa [#allocation4], 1

</llo_original>
